<compile_context>
chip_gen: v6e
topology: v6e:2x2x1
jax: 0.10.0
libtpu: 0.0.40
codegen_flags: <defaults>
</compile_context>

<pallas_src>
import functools

import jax
import jax.numpy as jnp
import numpy as np
from jax.experimental import pallas as pl
from jax.experimental.pallas import tpu as pltpu


def _round_up(x, m):
    return (x + m - 1) // m * m


def _cls_kernel(h_ref, lbl_ref, w1_ref, b1_ref, w2_ref, b2_ref,
                logits_ref, lossrow_ref, *, num_labels):
    """One batch tile: summary proj + tanh -> classifier -> per-row CE loss.

    h_ref      : VMEM (tile_b, H)      last-token activations (f32 or bf16)
    lbl_ref    : VMEM (tile_b, 1)      i32 labels
    w1_ref     : VMEM (H, H)           summary projection weight, [in, out]
    b1_ref     : VMEM (1, H)
    w2_ref     : VMEM (H, L_pad)       classifier weight, [in, out], zero-padded cols
    b2_ref     : VMEM (1, L_pad)
    logits_ref : VMEM (tile_b, L_pad)  f32 output (only cols < num_labels meaningful)
    lossrow_ref: VMEM (tile_b, 128)    f32 output, per-row CE broadcast across lanes
    """
    h = h_ref[...]

    # SequenceSummary projection + tanh (MXU accumulates in f32; tanh in f32).
    z = jnp.tanh(
        jnp.dot(h.astype(w1_ref.dtype), w1_ref[...],
                preferred_element_type=jnp.float32)
        + b1_ref[...].astype(jnp.float32))

    # Classifier Linear(d_model -> num_labels), lane-padded N dimension.
    logits = (jnp.dot(z.astype(w2_ref.dtype), w2_ref[...],
                      preferred_element_type=jnp.float32)
              + b2_ref[...].astype(jnp.float32))
    logits_ref[...] = logits

    # Fused CrossEntropy per row; padded columns masked out of the softmax.
    # TODO(synk): torch CrossEntropyLoss ignore_index=-100 is not handled
    # (labels are assumed valid in [0, num_labels)).
    col = jax.lax.broadcasted_iota(jnp.int32, logits.shape, 1)
    valid = col < num_labels
    masked = jnp.where(valid, logits, jnp.float32(-1e30))
    m = jnp.max(masked, axis=-1, keepdims=True)
    lse = jnp.log(jnp.sum(jnp.exp(masked - m), axis=-1, keepdims=True)) + m
    one_hot = jnp.logical_and(col == lbl_ref[...], valid).astype(jnp.float32)
    picked = jnp.sum(logits * one_hot, axis=-1, keepdims=True)
    per_row = lse - picked                                       # (tile_b, 1)
    lossrow_ref[...] = jnp.broadcast_to(per_row, lossrow_ref.shape)


def classification_forward(hidden_states, labels, params):
    """Returns (loss, logits) like classification_model.forward.

    hidden_states: [B, S, H]  output of the (external) pretrained backbone.
    labels       : [B]        integer class ids in [0, num_labels).
    """
    B, S, H = hidden_states.shape
    L = params["w2"].shape[1]

    L_pad = _round_up(max(L, 128), 128)
    tile_b = min(128, _round_up(B, 8))
    B_pad = _round_up(B, tile_b)
    n_tiles = B_pad // tile_b

    # summary_type == 'last': slice only the last token before the pallas_call
    # so HBM->VMEM traffic is B*H, not B*S*H. Keep the native dtype (no f32 cast).
    h_last = hidden_states[:, -1, :]
    h_last = jnp.pad(h_last, ((0, B_pad - B), (0, 0)))
    labels_p = jnp.pad(labels.astype(jnp.int32), (0, B_pad - B)).reshape(B_pad, 1)

    # Lane-pad the classifier so the output tile is a dense multiple of 128.
    w2 = jnp.pad(params["w2"], ((0, 0), (0, L_pad - L)))
    b2 = jnp.pad(params["b2"], ((0, 0), (0, L_pad - L)))
    w1, b1 = params["w1"], params["b1"]

    # VMEM budget: resident weights + double-buffered per-step tiles (+ headroom).
    x_bytes = jnp.dtype(h_last.dtype).itemsize
    w_bytes = jnp.dtype(w1.dtype).itemsize
    weights_b = (H * H + H) * w_bytes + (H + 1) * L_pad * w_bytes
    acts_b = tile_b * (H * x_bytes + 4 + L_pad * 4 + 128 * 4)
    vmem_limit = int(min(64 << 20, max(32 << 20, 2 * (2 * weights_b + 2 * acts_b))))

    kernel = functools.partial(_cls_kernel, num_labels=L)

    logits_pad, loss_rows = pl.pallas_call(
        kernel,
        out_shape=(
            jax.ShapeDtypeStruct((B_pad, L_pad), jnp.float32),
            jax.ShapeDtypeStruct((B_pad, 128), jnp.float32),
        ),
        grid_spec=pltpu.PrefetchScalarGridSpec(
            num_scalar_prefetch=0,
            grid=(n_tiles,),
            in_specs=[
                pl.BlockSpec((tile_b, H), lambda i: (i, 0)),   # last-token acts
                pl.BlockSpec((tile_b, 1), lambda i: (i, 0)),   # labels
                pl.BlockSpec((H, H), lambda i: (0, 0)),        # w1 (resident)
                pl.BlockSpec((1, H), lambda i: (0, 0)),        # b1 (resident)
                pl.BlockSpec((H, L_pad), lambda i: (0, 0)),    # w2 (resident)
                pl.BlockSpec((1, L_pad), lambda i: (0, 0)),    # b2 (resident)
            ],
            out_specs=(
                pl.BlockSpec((tile_b, L_pad), lambda i: (i, 0)),
                pl.BlockSpec((tile_b, 128), lambda i: (i, 0)),
            ),
        ),
        compiler_params=pltpu.CompilerParams(
            dimension_semantics=("parallel",),
            vmem_limit_bytes=vmem_limit,
        ),
    )(h_last, labels_p, w1, b1, w2, b2)

    logits = logits_pad[:B, :L]
    loss = jnp.sum(loss_rows[:B, 0]) / B      # CrossEntropyLoss(mean)
    return loss, logits


def init_params(key, d_model, num_labels, num_classifier=1):
    """Deterministic parameter init mirroring the module's __init__ shapes."""
    dim_list = np.linspace(d_model, num_labels, num_classifier + 1,
                           dtype=np.int32)
    assert num_classifier == 1, "kernel is specialized to num_classifier=1"
    k1, k2, k3, k4 = jax.random.split(key, 4)
    # summary projection: Linear(d_model, d_model); stored as [in, out]
    w1 = jax.random.normal(k1, (d_model, d_model), jnp.float32) * 0.05
    b1 = jax.random.normal(k2, (1, d_model), jnp.float32) * 0.05
    # classifier: Linear(dim_list[0], dim_list[1]); stored as [in, out]
    w2 = jax.random.normal(k3, (int(dim_list[0]), int(dim_list[1])),
                           jnp.float32) * 0.05
    b2 = jax.random.normal(k4, (1, int(dim_list[1])), jnp.float32) * 0.05
    return {"w1": w1, "b1": b1, "w2": w2, "b2": b2}


def _ref_forward(hidden_states, labels, params):
    """Pure-JAX reference for correctness checking."""
    h = hidden_states[:, -1, :]
    z = jnp.tanh(h @ params["w1"] + params["b1"])
    logits = z @ params["w2"] + params["b2"]
    m = jnp.max(logits, axis=-1, keepdims=True)
    lse = jnp.log(jnp.sum(jnp.exp(logits - m), axis=-1, keepdims=True)) + m
    picked = jnp.take_along_axis(logits, labels[:, None], axis=-1)
    loss = jnp.mean(lse - picked)
    return loss, logits


if __name__ == "__main__":
    B, S, H, L = 2, 8, 32, 4   # batch, seq_len, d_model/hidden_size, num_labels

    key = jax.random.PRNGKey(0)
    k_hid, k_lbl, k_par = jax.random.split(key, 3)

    hidden_states = jax.random.normal(k_hid, (B, S, H), jnp.float32)
    labels = jax.random.randint(k_lbl, (B,), 0, L, jnp.int32)
    params = init_params(k_par, H, L, num_classifier=1)

    ref_loss, ref_logits = _ref_forward(hidden_states, labels, params)

    # f32 path.
    loss, logits = jax.block_until_ready(
        classification_forward(hidden_states, labels, params))
    assert np.allclose(np.asarray(logits), np.asarray(ref_logits),
                       rtol=1e-4, atol=1e-4)
    assert np.allclose(np.asarray(loss), np.asarray(ref_loss),
                       rtol=1e-4, atol=1e-4)

    # bf16 feed (activations + weights), f32 MXU accumulation inside the kernel.
    params_bf16 = jax.tree_util.tree_map(lambda p: p.astype(jnp.bfloat16), params)
    loss_bf, logits_bf = jax.block_until_ready(
        classification_forward(hidden_states.astype(jnp.bfloat16),
                               labels, params_bf16))
    assert np.allclose(np.asarray(logits_bf), np.asarray(ref_logits),
                       rtol=5e-2, atol=5e-2)
    assert np.allclose(np.asarray(loss_bf), np.asarray(ref_loss),
                       rtol=5e-2, atol=5e-2)

    print("KERNEL_OK")
</pallas_src>

<mosaic_0001>
module attributes {stable_mosaic.version = 11 : i64} {
  func.func @_cls_kernel(%arg0: i32, %arg1: memref<8x32xf32, #tpu.memory_space<vmem>>, %arg2: memref<8x1xi32, #tpu.memory_space<vmem>>, %arg3: memref<32x32xf32, #tpu.memory_space<vmem>>, %arg4: memref<1x32xf32, #tpu.memory_space<vmem>>, %arg5: memref<32x128xf32, #tpu.memory_space<vmem>>, %arg6: memref<1x128xf32, #tpu.memory_space<vmem>>, %arg7: memref<8x128xf32, #tpu.memory_space<vmem>>, %arg8: memref<8x128xf32, #tpu.memory_space<vmem>>) attributes {dimension_semantics = [#tpu.dimension_semantics<parallel>], iteration_bounds = array<i64: 1>, scalar_prefetch = 0 : i64, scratch_operands = 0 : i64, tpu.core_type = #tpu.core_type<tc>, window_params = [{transform_indices = @transform_0, window_bounds = array<i64: 8, 32>}, {transform_indices = @transform_1, window_bounds = array<i64: 8, 1>}, {pipeline_mode = #tpu.pipeline_mode<synchronous>, transform_indices = @transform_2, window_bounds = array<i64: 32, 32>}, {pipeline_mode = #tpu.pipeline_mode<synchronous>, transform_indices = @transform_3, window_bounds = array<i64: 1, 32>}, {pipeline_mode = #tpu.pipeline_mode<synchronous>, transform_indices = @transform_4, window_bounds = array<i64: 32, 128>}, {pipeline_mode = #tpu.pipeline_mode<synchronous>, transform_indices = @transform_5, window_bounds = array<i64: 1, 128>}, {transform_indices = @transform_6, window_bounds = array<i64: 8, 128>}, {transform_indices = @transform_7, window_bounds = array<i64: 8, 128>}]} {
    %c0 = arith.constant 0 : index
    %c0_0 = arith.constant 0 : index
    %0 = vector.load %arg1[%c0, %c0_0] : memref<8x32xf32, #tpu.memory_space<vmem>>, vector<8x32xf32>
    %c0_1 = arith.constant 0 : index
    %c0_2 = arith.constant 0 : index
    %1 = vector.load %arg3[%c0_1, %c0_2] : memref<32x32xf32, #tpu.memory_space<vmem>>, vector<32x32xf32>
    %cst = arith.constant dense<0.000000e+00> : vector<8x32xf32>
    %2 = tpu.matmul %0, %1, %cst {dimension_numbers = #tpu.dot_dimension_numbers<[1], [0], [0], [1], [0, 0, 1, 1], [], []>} : vector<8x32xf32>, vector<32x32xf32>, vector<8x32xf32> -> vector<8x32xf32>
    %c0_3 = arith.constant 0 : index
    %c0_4 = arith.constant 0 : index
    %3 = vector.load %arg4[%c0_3, %c0_4] : memref<1x32xf32, #tpu.memory_space<vmem>>, vector<1x32xf32>
    %4 = vector.broadcast %3 : vector<1x32xf32> to vector<8x32xf32>
    %5 = arith.addf %2, %4 : vector<8x32xf32>
    %6 = math.tanh %5 : vector<8x32xf32>
    %c0_5 = arith.constant 0 : index
    %c0_6 = arith.constant 0 : index
    %7 = vector.load %arg5[%c0_5, %c0_6] : memref<32x128xf32, #tpu.memory_space<vmem>>, vector<32x128xf32>
    %cst_7 = arith.constant dense<0.000000e+00> : vector<8x128xf32>
    %8 = tpu.matmul %6, %7, %cst_7 {dimension_numbers = #tpu.dot_dimension_numbers<[1], [0], [0], [1], [0, 0, 1, 1], [], []>} : vector<8x32xf32>, vector<32x128xf32>, vector<8x128xf32> -> vector<8x128xf32>
    %c0_8 = arith.constant 0 : index
    %c0_9 = arith.constant 0 : index
    %9 = vector.load %arg6[%c0_8, %c0_9] : memref<1x128xf32, #tpu.memory_space<vmem>>, vector<1x128xf32>
    %10 = vector.broadcast %9 : vector<1x128xf32> to vector<8x128xf32>
    %11 = arith.addf %8, %10 : vector<8x128xf32>
    %c0_10 = arith.constant 0 : index
    %c0_11 = arith.constant 0 : index
    %12 = vector.load %arg7[%c0_10, %c0_11] : memref<8x128xf32, #tpu.memory_space<vmem>>, vector<8x128xf32>
    tpu.vector_store %arg7[%c0_10, %c0_11], %11 {strides = array<i32>} : memref<8x128xf32, #tpu.memory_space<vmem>>, vector<8x128xf32>,
    %13 = tpu.iota {dimensions = array<i32: 1>} : vector<8x128xi32>
    %c4_i32 = arith.constant 4 : i32
    %14 = vector.broadcast %c4_i32 : i32 to vector<8x128xi32>
    %15 = arith.cmpi slt, %13, %14 : vector<8x128xi32>
    %cst_12 = arith.constant -1.000000e+30 : f32
    %16 = vector.broadcast %cst_12 : f32 to vector<8x128xf32>
    %17 = arith.select %15, %11, %16 : vector<8x128xi1>, vector<8x128xf32>
    %cst_13 = arith.constant dense<0xFF800000> : vector<8xf32>
    %18 = vector.multi_reduction <maximumf>, %17, %cst_13 [1] : vector<8x128xf32> to vector<8xf32>
    %19 = vector.shape_cast %18 : vector<8xf32> to vector<8x1xf32>
    %20 = vector.broadcast %19 : vector<8x1xf32> to vector<8x128xf32>
    %21 = arith.subf %17, %20 : vector<8x128xf32>
    %22 = math.exp %21 : vector<8x128xf32>
    %cst_14 = arith.constant dense<0.000000e+00> : vector<8xf32>
    %23 = vector.multi_reduction <add>, %22, %cst_14 [1] : vector<8x128xf32> to vector<8xf32>
    %24 = vector.shape_cast %23 : vector<8xf32> to vector<8x1xf32>
    %25 = math.log %24 : vector<8x1xf32>
    %26 = arith.addf %25, %19 : vector<8x1xf32>
    %c0_15 = arith.constant 0 : index
    %c0_16 = arith.constant 0 : index
    %27 = vector.load %arg2[%c0_15, %c0_16] : memref<8x1xi32, #tpu.memory_space<vmem>>, vector<8x1xi32>
    %28 = vector.broadcast %27 : vector<8x1xi32> to vector<8x128xi32>
    %29 = arith.cmpi eq, %13, %28 : vector<8x128xi32>
    %30 = arith.andi %29, %15 : vector<8x128xi1>
    %31 = arith.extui %30 : vector<8x128xi1> to vector<8x128xi32>
    %32 = arith.sitofp %31 : vector<8x128xi32> to vector<8x128xf32>
    %33 = arith.mulf %11, %32 : vector<8x128xf32>
    %cst_17 = arith.constant dense<0.000000e+00> : vector<8xf32>
    %34 = vector.multi_reduction <add>, %33, %cst_17 [1] : vector<8x128xf32> to vector<8xf32>
    %35 = vector.shape_cast %34 : vector<8xf32> to vector<8x1xf32>
    %36 = arith.subf %26, %35 : vector<8x1xf32>
    %37 = vector.shape_cast %36 : vector<8x1xf32> to vector<8x1xf32>
    %38 = vector.broadcast %37 : vector<8x1xf32> to vector<8x128xf32>
    %c0_18 = arith.constant 0 : index
    %c0_19 = arith.constant 0 : index
    %39 = vector.load %arg8[%c0_18, %c0_19] : memref<8x128xf32, #tpu.memory_space<vmem>>, vector<8x128xf32>
    tpu.vector_store %arg8[%c0_18, %c0_19], %38 {strides = array<i32>} : memref<8x128xf32, #tpu.memory_space<vmem>>, vector<8x128xf32>,
    return
  }
  func.func @transform_0(%arg0: i32) -> (i32, i32) {
    %c0_i32 = arith.constant 0 : i32
    %c0_i32_0 = arith.constant 0 : i32
    return %arg0, %c0_i32 : i32, i32
  }
  func.func @transform_1(%arg0: i32) -> (i32, i32) {
    %c0_i32 = arith.constant 0 : i32
    %c0_i32_0 = arith.constant 0 : i32
    return %arg0, %c0_i32 : i32, i32
  }
  func.func @transform_2(%arg0: i32) -> (i32, i32) {
    %c0_i32 = arith.constant 0 : i32
    %c0_i32_0 = arith.constant 0 : i32
    %c0_i32_1 = arith.constant 0 : i32
    return %c0_i32, %c0_i32_0 : i32, i32
  }
  func.func @transform_3(%arg0: i32) -> (i32, i32) {
    %c0_i32 = arith.constant 0 : i32
    %c0_i32_0 = arith.constant 0 : i32
    %c0_i32_1 = arith.constant 0 : i32
    return %c0_i32, %c0_i32_0 : i32, i32
  }
  func.func @transform_4(%arg0: i32) -> (i32, i32) {
    %c0_i32 = arith.constant 0 : i32
    %c0_i32_0 = arith.constant 0 : i32
    %c0_i32_1 = arith.constant 0 : i32
    return %c0_i32, %c0_i32_0 : i32, i32
  }
  func.func @transform_5(%arg0: i32) -> (i32, i32) {
    %c0_i32 = arith.constant 0 : i32
    %c0_i32_0 = arith.constant 0 : i32
    %c0_i32_1 = arith.constant 0 : i32
    return %c0_i32, %c0_i32_0 : i32, i32
  }
  func.func @transform_6(%arg0: i32) -> (i32, i32) {
    %c0_i32 = arith.constant 0 : i32
    %c0_i32_0 = arith.constant 0 : i32
    return %arg0, %c0_i32 : i32, i32
  }
  func.func @transform_7(%arg0: i32) -> (i32, i32) {
    %c0_i32 = arith.constant 0 : i32
    %c0_i32_0 = arith.constant 0 : i32
    return %arg0, %c0_i32 : i32, i32
  }
}

</mosaic_0001>

<llo_original>
// kernel: tpu_custom_call.1
$region0: #{tpu_custom_call.1}
  #allocation0 [shape = 'u32[]', space=smem, size = 0x4, offset = 0x4, fixed_abs, tag = 'smem constant byte address 0x4 - core index']
  #allocation1 [shape = 'u32[144,128]{1,0:T(1,128)}', space=vmem, size = 0x12000, scoped, tag = 'internal scratch']
  %s0 = inlined_call_operand.vmem [shape: f32[8,32], index: 0, kind: input, shape index: {}]
  %s1 = inlined_call_operand.vmem [shape: s32[8,1], index: 1, kind: input, shape index: {}]
  %s2 = inlined_call_operand.hbm [shape: f32[32,32], index: 2, kind: input, shape index: {}]
  %s3 = inlined_call_operand.vmem [shape: f32[1,32], index: 3, kind: input, shape index: {}]
  %s4 = inlined_call_operand.hbm [shape: f32[32,128], index: 4, kind: input, shape index: {}]
  %s5 = inlined_call_operand.vmem [shape: f32[1,128], index: 5, kind: input, shape index: {}]
  %s6 = inlined_call_operand.hbm [shape: f32[8,128], index: 6, kind: output, shape index: {0}]
  %s7 = inlined_call_operand.hbm [shape: f32[8,128], index: 7, kind: output, shape index: {1}]
  %8 = xla_tuple %s6, %s7
  %s9 = sld [smem:[#allocation0]]
  $region50: #{tpu_custom_call.1} parent=0
    _
  %s11 = ssub.s32 1, %s9
  %s12 = scalar_select 0, %s11, %s9
  $region1: #{tpu_custom_call.1} parent=0
    #allocation2 [shape = 'u8[16384]{0}', space=vmem, size = 0x4000, scoped, tag = 'input window, operand 2, single buffered']
    #allocation3 [shape = 's32[1]{0}', space=sflag, size = 0x4, scoped, tag = 'scoped memory for tpu_custom_call.1']
    #allocation4 [shape = 's32[1]{0}', space=sflag, size = 0x4, scoped, tag = 'scoped memory for tpu_custom_call.1']
    #allocation5 [shape = 'u8[16384]{0}', space=vmem, size = 0x4000, scoped, tag = 'input window, operand 4, single buffered']
    #allocation6 [shape = 's32[1]{0}', space=sflag, size = 0x4, scoped, tag = 'scoped memory for tpu_custom_call.1']
    #allocation7 [shape = 'u8[4096]{0}', space=vmem, size = 0x1000, scoped, tag = 'output window, operand 0, single buffered']
    #allocation8 [shape = 'u8[4096]{0}', space=vmem, size = 0x1000, scoped, tag = 'output window, operand 1, single buffered']
    #allocation9 [shape = 's32[1]{0}', space=sflag, size = 0x4, scoped, tag = 'scoped memory for tpu_custom_call.1']
    %13 = vsyncpa [#allocation3], 0
    %14 = vsyncpa [#allocation6], 0
    %15 = vsyncpa [#allocation4], 0
    %16 = vsyncpa [#allocation9], 0
    // Predicated region
    $region2: #{tpu_custom_call.1} parent=1 // pred_check
      _
    $region3: #{tpu_custom_call.1} parent=1 // pred_check_branch
      %18 = sbr.rel (0) target = $region5
    $region4: #{tpu_custom_call.1} parent=1 // pred_region
      _
    $region5: #{tpu_custom_call.1} parent=1 // pred_fallthru
      _
    // Predicated region
    $region6: #{tpu_custom_call.1} parent=1 // pred_check
      _
    $region7: #{tpu_custom_call.1} parent=1 // pred_check_branch
      %20 = sbr.rel (0) target = $region9
    $region8: #{tpu_custom_call.1} parent=1 // pred_region
      _
    $region9: #{tpu_custom_call.1} parent=1 // pred_fallthru
      _
    // Predicated region
    $region10: #{tpu_custom_call.1} parent=1 // pred_check
      _
    $region11: #{tpu_custom_call.1} parent=1 // pred_check_branch
      %22 = sbr.rel (0) target = $region13
    $region12: #{tpu_custom_call.1} parent=1 // pred_region
      %s24 = ssub.s32 512, 512
      %25 = vsyncadd [#allocation3], %s24
      %s26 = sshll.u32 [#allocation2], 4
      %s27 = int_to_ptr.vmem [resolvable:$true] %s26
      %32 = dma.hbm_to_vmem [thread:$0]  %s2, 512, %s27, [#allocation3], 128, 128, 8
    $region13: #{tpu_custom_call.1} parent=1 // pred_fallthru
      _
    // Predicated region
    $region14: #{tpu_custom_call.1} parent=1 // pred_check
      _
    $region15: #{tpu_custom_call.1} parent=1 // pred_check_branch
      %34 = sbr.rel (0) target = $region17
    $region16: #{tpu_custom_call.1} parent=1 // pred_region
      _
    $region17: #{tpu_custom_call.1} parent=1 // pred_fallthru
      _
    // Predicated region
    $region18: #{tpu_custom_call.1} parent=1 // pred_check
      _
    $region19: #{tpu_custom_call.1} parent=1 // pred_check_branch
      %36 = sbr.rel (0) target = $region21
    $region20: #{tpu_custom_call.1} parent=1 // pred_region
      %s38 = ssub.s32 512, 512
      %39 = vsyncadd [#allocation6], %s38
      %s40 = sshll.u32 [#allocation5], 4
      %s41 = int_to_ptr.vmem [resolvable:$true] %s40
      %46 = dma.hbm_to_vmem [thread:$0]  %s4, 512, %s41, [#allocation6], 128, 128, 8
    $region21: #{tpu_custom_call.1} parent=1 // pred_fallthru
      _
    // Predicated region
    $region22: #{tpu_custom_call.1} parent=1 // pred_check
      _
    $region23: #{tpu_custom_call.1} parent=1 // pred_check_branch
      %48 = sbr.rel (0) target = $region25
    $region24: #{tpu_custom_call.1} parent=1 // pred_region
      _
    $region25: #{tpu_custom_call.1} parent=1 // pred_fallthru
      _
    // Predicated region
    $region26: #{tpu_custom_call.1} parent=1 // pred_check
      _
    $region27: #{tpu_custom_call.1} parent=1 // pred_check_branch
      %50 = sbr.rel (0) target = $region29
    $region28: #{tpu_custom_call.1} parent=1 // pred_region
      %51 = dma.done [#allocation3], 512
    $region29: #{tpu_custom_call.1} parent=1 // pred_fallthru
      _
    // Predicated region
    $region30: #{tpu_custom_call.1} parent=1 // pred_check
      _
    $region31: #{tpu_custom_call.1} parent=1 // pred_check_branch
      %53 = sbr.rel (0) target = $region33
    $region32: #{tpu_custom_call.1} parent=1 // pred_region
      %54 = dma.done [#allocation6], 512
    $region33: #{tpu_custom_call.1} parent=1 // pred_fallthru
      _
    %v55 = vld [vmem:[%s0] sm:$0xff]
    %v56 = vld [vmem:[#allocation2] sm:$0xff]
    %v57 = vld [vmem:[#allocation2 + $0x8] sm:$0xff]
    %v58 = vld [vmem:[#allocation2 + $0x10] sm:$0xff]
    %v59 = vld [vmem:[#allocation2 + $0x18] sm:$0xff]
    %v60 = vld [vmem:[%s3] sm:$0x1]
    %v62 = vlaneseq
    %v63 = vshrl.u32 %v62, 7
    %v64 = vsub.s32 0, %v63
    %v65 = vrot.slane %v60, %v64
    %vm67 = vcmask 261120
    %v69 = vsel %vm67, %v55, 0
    %71 = vmatprep.subr.mxu0 0.0
    %72 = vmatpush1.msra.mxu0 0.0
    %73 = vmatprep.subr.mxu0 0.0
    %74 = vmatpush1.msra.mxu0 0.0
    %75 = vmatprep.subr.mxu0 0.0
    %76 = vmatpush1.msra.mxu0 0.0
    %77 = vmatprep.subr.mxu0 0.0
    %78 = vmatpush1.msra.mxu0 0.0
    %79 = vmatprep.subr.mxu0 0.0
    %80 = vmatpush1.msra.mxu0 0.0
    %81 = vmatprep.subr.mxu0 0.0
    %82 = vmatpush1.msra.mxu0 0.0
    %83 = vmatprep.subr.mxu0 0.0
    %84 = vmatpush1.msra.mxu0 0.0
    %85 = vmatprep.subr.mxu0 0.0
    %86 = vmatpush1.msra.mxu0 0.0
    %87 = vmatprep.subr.mxu0 0.0
    %88 = vmatpush1.msra.mxu0 0.0
    %89 = vmatprep.subr.mxu0 0.0
    %90 = vmatpush1.msra.mxu0 0.0
    %91 = vmatprep.subr.mxu0 0.0
    %92 = vmatpush1.msra.mxu0 0.0
    %93 = vmatprep.subr.mxu0 0.0
    %94 = vmatpush1.msra.mxu0 0.0
    %95 = vmatprep.subr.mxu0 0.0
    %96 = vmatpush1.msra.mxu0 %v59
    %97 = vmatprep.subr.mxu0 0.0
    %98 = vmatpush1.msra.mxu0 %v58
    %99 = vmatprep.subr.mxu0 0.0
    %100 = vmatpush1.msra.mxu0 %v57
    %101 = vmatprep.subr.mxu0 0.0
    %102 = vmatpush1.msra.mxu0 %v56
    %103 = vmatprep.subr.mxu0 0.0
    %104 = vmatpush2.msra.mxu0 0.0
    %105 = vmatprep.subr.mxu0 0.0
    %106 = vmatpush2.msra.mxu0 0.0
    %107 = vmatprep.subr.mxu0 0.0
    %108 = vmatpush2.msra.mxu0 0.0
    %109 = vmatprep.subr.mxu0 0.0
    %110 = vmatpush2.msra.mxu0 0.0
    %111 = vmatprep.subr.mxu0 0.0
    %112 = vmatpush2.msra.mxu0 0.0
    %113 = vmatprep.subr.mxu0 0.0
    %114 = vmatpush2.msra.mxu0 0.0
    %115 = vmatprep.subr.mxu0 0.0
    %116 = vmatpush2.msra.mxu0 0.0
    %117 = vmatprep.subr.mxu0 0.0
    %118 = vmatpush2.msra.mxu0 0.0
    %119 = vmatprep.subr.mxu0 0.0
    %120 = vmatpush2.msra.mxu0 0.0
    %121 = vmatprep.subr.mxu0 0.0
    %122 = vmatpush2.msra.mxu0 0.0
    %123 = vmatprep.subr.mxu0 0.0
    %124 = vmatpush2.msra.mxu0 0.0
    %125 = vmatprep.subr.mxu0 0.0
    %126 = vmatpush2.msra.mxu0 0.0
    %127 = vmatprep.subr.mxu0 0.0
    %128 = vmatpush2.msra.mxu0 0.0
    %129 = vmatprep.subr.mxu0 0.0
    %130 = vmatpush2.msra.mxu0 0.0
    %131 = vmatprep.subr.mxu0 0.0
    %132 = vmatpush2.msra.mxu0 0.0
    %133 = vmatprep.subr.mxu0 0.0
    %134 = vmatpush2.msra.mxu0 0.0
    %135 = vmatprep.mubr.f32.mxu0 0.0
    %136 = vmatmul.mubr.f32.gmra.mxu0 %v69
    %v137 = vpop.f32.mrf.mxu0
    %v138 = vadd.f32 %v65, %v137
    %v139 = vpop.f32.mrf.mxu0
    %140 = vdwg.mxu0
    %v141 = vtanh.pop %v138
    %v142 = vld [vmem:[#allocation5] sm:$0xff]
    %v143 = vld [vmem:[#allocation5 + $0x8] sm:$0xff]
    %v144 = vld [vmem:[#allocation5 + $0x10] sm:$0xff]
    %v145 = vld [vmem:[#allocation5 + $0x18] sm:$0xff]
    %v146 = vld [vmem:[%s5] sm:$0x1]
    %v148 = vlaneseq
    %v149 = vshrl.u32 %v148, 7
    %v150 = vsub.s32 0, %v149
    %v151 = vrot.slane %v146, %v150
    %v154 = vsel %vm67, %v141, 0
    %156 = vmatprep.subr.mxu0 0.0
    %157 = vmatpush1.msra.mxu0 0.0
    %158 = vmatprep.subr.mxu0 0.0
    %159 = vmatpush1.msra.mxu0 0.0
    %160 = vmatprep.subr.mxu0 0.0
    %161 = vmatpush1.msra.mxu0 0.0
    %162 = vmatprep.subr.mxu0 0.0
    %163 = vmatpush1.msra.mxu0 0.0
    %164 = vmatprep.subr.mxu0 0.0
    %165 = vmatpush1.msra.mxu0 0.0
    %166 = vmatprep.subr.mxu0 0.0
    %167 = vmatpush1.msra.mxu0 0.0
    %168 = vmatprep.subr.mxu0 0.0
    %169 = vmatpush1.msra.mxu0 0.0
    %170 = vmatprep.subr.mxu0 0.0
    %171 = vmatpush1.msra.mxu0 0.0
    %172 = vmatprep.subr.mxu0 0.0
    %173 = vmatpush1.msra.mxu0 0.0
    %174 = vmatprep.subr.mxu0 0.0
    %175 = vmatpush1.msra.mxu0 0.0
    %176 = vmatprep.subr.mxu0 0.0
    %177 = vmatpush1.msra.mxu0 0.0
    %178 = vmatprep.subr.mxu0 0.0
    %179 = vmatpush1.msra.mxu0 0.0
    %180 = vmatprep.subr.mxu0 0.0
    %181 = vmatpush1.msra.mxu0 %v145
    %182 = vmatprep.subr.mxu0 0.0
    %183 = vmatpush1.msra.mxu0 %v144
    %184 = vmatprep.subr.mxu0 0.0
    %185 = vmatpush1.msra.mxu0 %v143
    %186 = vmatprep.subr.mxu0 0.0
    %187 = vmatpush1.msra.mxu0 %v142
    %188 = vmatprep.subr.mxu0 0.0
    %189 = vmatpush2.msra.mxu0 0.0
    %190 = vmatprep.subr.mxu0 0.0
    %191 = vmatpush2.msra.mxu0 0.0
    %192 = vmatprep.subr.mxu0 0.0
    %193 = vmatpush2.msra.mxu0 0.0
    %194 = vmatprep.subr.mxu0 0.0
    %195 = vmatpush2.msra.mxu0 0.0
    %196 = vmatprep.subr.mxu0 0.0
    %197 = vmatpush2.msra.mxu0 0.0
    %198 = vmatprep.subr.mxu0 0.0
    %199 = vmatpush2.msra.mxu0 0.0
    %200 = vmatprep.subr.mxu0 0.0
    %201 = vmatpush2.msra.mxu0 0.0
    %202 = vmatprep.subr.mxu0 0.0
    %203 = vmatpush2.msra.mxu0 0.0
    %204 = vmatprep.subr.mxu0 0.0
    %205 = vmatpush2.msra.mxu0 0.0
    %206 = vmatprep.subr.mxu0 0.0
    %207 = vmatpush2.msra.mxu0 0.0
    %208 = vmatprep.subr.mxu0 0.0
    %209 = vmatpush2.msra.mxu0 0.0
    %210 = vmatprep.subr.mxu0 0.0
    %211 = vmatpush2.msra.mxu0 0.0
    %212 = vmatprep.subr.mxu0 0.0
    %213 = vmatpush2.msra.mxu0 0.0
    %214 = vmatprep.subr.mxu0 0.0
    %215 = vmatpush2.msra.mxu0 0.0
    %216 = vmatprep.subr.mxu0 0.0
    %217 = vmatpush2.msra.mxu0 0.0
    %218 = vmatprep.subr.mxu0 0.0
    %219 = vmatpush2.msra.mxu0 0.0
    %220 = vmatprep.mubr.f32.mxu0 0.0
    %221 = vmatmul.mubr.f32.gmra.mxu0 %v154
    %v222 = vpop.f32.mrf.mxu0
    %v223 = vadd.f32 %v151, %v222
    %v224 = vpop.f32.mrf.mxu0
    %225 = vdwg.mxu0
    %226 = vst [vmem:[#allocation7] sm:$0xff] %v223
    %v227 = vlaneseq
    %v228 = vand.u32 %v227, 127
    %vm229 = vcmp.lt.s32.totalorder %v228, 4
    %v230 = vsel %vm229, %v223, -1e+30
    %231 = vmax.xlane.f32.xlu0 %v230
    %v232 = vpop.xlane.xlu0 %231
    %v233 = vsub.f32 %v230, %v232
    %v234 = vmul.f32 %v233, 1.442695
    %v235 = vpow.pop %v234
    %236 = vadd.xlane.f32.xlu0 %v235
    %v237 = vpop.xlane.xlu0 %236
    %v238 = vlog2.pop %v237
    %v239 = vmul.f32 %v238, 0.6931472
    %v240 = vadd.f32 %v239, %v232
    %v241 = vld [vmem:[%s1] sm:$0xff]
    %242 = vset.pattern.permute.xlu0 0
    %243 = vperm.xlu0 %242, %v241
    %v244 = vpop.permute.xlu0 %243
    %vm245 = vcmp.eq.s32.totalorder %v228, %v244
    %vm246 = vmand %vm245, %vm229
    %v247 = vsel %vm246, 1, 0
    %v248 = vcvt.s32.f32 %v247
    %v249 = vmul.f32 %v223, %v248
    %250 = vadd.xlane.f32.xlu0 %v249
    %v251 = vpop.xlane.xlu0 %250
    %v252 = vsub.f32 %v240, %v251
    %253 = vst [vmem:[#allocation8] sm:$0xff] %v252
    // Predicated region
    $region34: #{tpu_custom_call.1} parent=1 // pred_check
      _
    $region35: #{tpu_custom_call.1} parent=1 // pred_check_branch
      %255 = sbr.rel (0) target = $region37
    $region36: #{tpu_custom_call.1} parent=1 // pred_region
      %s257 = ssub.s32 128, 128
      %258 = vsyncadd [#allocation4], %s257
      %s260 = sshll.u32 [#allocation7], 4
      %s261 = int_to_ptr.vmem [resolvable:$true] %s260
      %263 = dma.vmem_to_hbm [thread:$0]  %s261, 128, %s6, [#allocation4]
    $region37: #{tpu_custom_call.1} parent=1 // pred_fallthru
      _
    // Predicated region
    $region38: #{tpu_custom_call.1} parent=1 // pred_check
      _
    $region39: #{tpu_custom_call.1} parent=1 // pred_check_branch
      %265 = sbr.rel (0) target = $region41
    $region40: #{tpu_custom_call.1} parent=1 // pred_region
      %s267 = ssub.s32 128, 128
      %268 = vsyncadd [#allocation9], %s267
      %s270 = sshll.u32 [#allocation8], 4
      %s271 = int_to_ptr.vmem [resolvable:$true] %s270
      %273 = dma.vmem_to_hbm [thread:$0]  %s271, 128, %s7, [#allocation9]
    $region41: #{tpu_custom_call.1} parent=1 // pred_fallthru
      _
    // Predicated region
    $region42: #{tpu_custom_call.1} parent=1 // pred_check
      _
    $region43: #{tpu_custom_call.1} parent=1 // pred_check_branch
      %275 = sbr.rel (0) target = $region45
    $region44: #{tpu_custom_call.1} parent=1 // pred_region
      %276 = dma.done [#allocation4], 128
    $region45: #{tpu_custom_call.1} parent=1 // pred_fallthru
      _
    // Predicated region
    $region46: #{tpu_custom_call.1} parent=1 // pred_check
      _
    $region47: #{tpu_custom_call.1} parent=1 // pred_check_branch
      %278 = sbr.rel (0) target = $region49
    $region48: #{tpu_custom_call.1} parent=1 // pred_region
      %279 = dma.done [#allocation9], 128
    $region49: #{tpu_custom_call.1} parent=1 // pred_fallthru
      _
    %280 = vsyncpa [#allocation3], 1
    %281 = vsyncpa [#allocation6], 1
    %282 = vsyncpa [#allocation4], 1
    %283 = vsyncpa [#allocation9], 1

</llo_original>
